<compile_context>
chip_gen: v7x
topology: tpu7x:2x2x1
jax: 0.10.0
libtpu: 0.0.40
codegen_flags: <defaults>
</compile_context>

<pallas_src>
import functools

import jax
import jax.numpy as jnp
from jax import lax
from jax.experimental import pallas as pl
from jax.experimental.pallas import tpu as pltpu


def _sepconv_kernel(x_ref, wdw_ref, wpw_ref, hw_ref, o_ref, *,
                    C, Cout, NB, H, W, KH, KW, pad):
    """Fused depthwise KxK + pointwise 1x1 conv, flattened-spatial layout.

    x_ref  : VMEM (NB*C, H*W)        lane-dense input rows, one per (n, c)
    wdw_ref: VMEM (KH*KW, NB*C, 1)   depthwise taps, batch-tiled per row
    wpw_ref: VMEM (C, Cout, 1)       pointwise weight columns
    hw_ref : VMEM (2, H*W)           row 0: h index per lane, row 1: w index
    o_ref  : VMEM (NB*Cout, H*W)     lane-dense output rows, one per (n, o)
    """
    HW = H * W
    x = x_ref[...].astype(jnp.float32)            # (NB*C, HW)

    idx = hw_ref[...]                             # (2, HW) int32
    hh = idx[0:1, :]                              # (1, HW) output-row index
    ww = idx[1:2, :]                              # (1, HW) output-col index

    # ---- depthwise KxK: XLU rolls + border-masked VPU broadcast-MACs ----
    acc = jnp.zeros((NB * C, HW), jnp.float32)
    for kh in range(KH):
        for kw in range(KW):
            dh = kh - pad
            dw = kw - pad
            shift = (-(dh * W + dw)) % HW         # static, non-negative
            shifted = x if shift == 0 else pltpu.roll(x, shift=shift, axis=1)

            # Border mask: tap reads x[h+dh, w+dw]; zero where that index
            # falls in the zero-padding (also kills the roll wrap-around).
            cond = None
            if dh > 0:
                cond = hh < (H - dh)
            elif dh < 0:
                cond = hh >= (-dh)
            if dw > 0:
                c2 = ww < (W - dw)
                cond = c2 if cond is None else (cond & c2)
            elif dw < 0:
                c2 = ww >= (-dw)
                cond = c2 if cond is None else (cond & c2)
            if cond is not None:
                shifted = jnp.where(cond, shifted, 0.0)

            tap = wdw_ref[kh * KW + kw].astype(jnp.float32)   # (NB*C, 1)
            acc = acc + shifted * tap

    # ---- pointwise 1x1: Cout-row broadcast-MACs per folded batch element ----
    wcols = [wpw_ref[c].astype(jnp.float32) for c in range(C)]   # (Cout, 1) each
    for n in range(NB):
        out = jnp.zeros((Cout, HW), jnp.float32)
        for c in range(C):
            out = out + wcols[c] * acc[n * C + c:n * C + c + 1, :]   # (Cout,1)*(1,HW)
        # Sublane-aligned dense (Cout, HW) store; no masked / lane-offset writes.
        o_ref[n * Cout:(n + 1) * Cout, :] = out.astype(o_ref.dtype)


def separable_conv2d(x_nchw, w_dw, w_pw, *, padding=1):
    """SeparableConv2d forward (stride=1, dilation=1, bias=False, 'same' size).

    x_nchw : (N, C, H, W)      input, PyTorch layout
    w_dw   : (C, 1, KH, KW)    depthwise conv weight (groups=C)
    w_pw   : (Cout, C, 1, 1)   pointwise conv weight
    returns: (N, Cout, H, W)   NCHW output
    """
    N, C, H, W = (int(d) for d in x_nchw.shape)
    KH, KW = int(w_dw.shape[2]), int(w_dw.shape[3])
    Cout = int(w_pw.shape[0])
    HW = H * W

    # The flattened-roll formulation needs output size == input size.
    assert 2 * padding == KH - 1 and 2 * padding == KW - 1, (
        "separable_conv2d kernel requires 'same' spatial size (2*pad == K-1)")
    # TODO(synk): general stride/dilation/padding would need the padded-scratch path.

    # Fold batch elements into the sublane dim so each grid step works on a
    # fully packed (NB*C <= 8, HW) tile; remaining batch goes to the grid
    # ("parallel" -> 2-way TC split on v7x when N//NB > 1).
    NB = min(N, max(1, 8 // C))
    while N % NB:
        NB -= 1
    NBC = NB * C

    # Free row-major reshapes / tiny (<=72 element) weight re-layouts.
    x2 = x_nchw.reshape(N * C, HW)
    wdw_k = jnp.tile(w_dw.reshape(C, KH * KW).T, (1, NB)).reshape(KH * KW, NBC, 1)
    wpw_k = w_pw.reshape(Cout, C).T.reshape(C, Cout, 1)
    # Per-lane (h, w) indices for border masks (computed host-side to avoid
    # in-kernel vector integer division).
    pos = jnp.arange(HW, dtype=jnp.int32)
    hw_idx = jnp.stack([pos // W, pos % W], axis=0)          # (2, HW) int32

    kernel = functools.partial(_sepconv_kernel, C=C, Cout=Cout, NB=NB,
                               H=H, W=W, KH=KH, KW=KW, pad=padding)

    out2 = pl.pallas_call(
        kernel,
        out_shape=jax.ShapeDtypeStruct((N * Cout, HW), x_nchw.dtype),
        grid_spec=pltpu.PrefetchScalarGridSpec(
            num_scalar_prefetch=0,
            grid=(N // NB,),
            in_specs=[
                pl.BlockSpec((NBC, HW), lambda g: (g, 0)),              # image rows
                pl.BlockSpec((KH * KW, NBC, 1), lambda g: (0, 0, 0)),   # dw taps
                pl.BlockSpec((C, Cout, 1), lambda g: (0, 0, 0)),        # pw columns
                pl.BlockSpec((2, HW), lambda g: (0, 0)),                # (h, w) idx
            ],
            out_specs=pl.BlockSpec((NB * Cout, HW), lambda g: (g, 0)),
        ),
        compiler_params=pltpu.CompilerParams(
            dimension_semantics=("parallel",)),
    )(x2, wdw_k, wpw_k, hw_idx)

    # Row-major reshape only: the kernel already wrote flattened NCHW.
    return out2.reshape(N, Cout, H, W)


def _reference_sepconv(x_nchw, w_dw, w_pw, *, padding=1):
    """Pure-JAX reference matching torch.nn.Conv2d semantics."""
    C = x_nchw.shape[1]
    dn = lax.conv_dimension_numbers(x_nchw.shape, w_dw.shape, ("NCHW", "OIHW", "NCHW"))
    y = lax.conv_general_dilated(
        x_nchw, w_dw, window_strides=(1, 1),
        padding=[(padding, padding), (padding, padding)],
        dimension_numbers=dn, feature_group_count=C)
    dn2 = lax.conv_dimension_numbers(y.shape, w_pw.shape, ("NCHW", "OIHW", "NCHW"))
    return lax.conv_general_dilated(
        y, w_pw, window_strides=(1, 1), padding=[(0, 0), (0, 0)],
        dimension_numbers=dn2)


if __name__ == "__main__":
    key = jax.random.PRNGKey(0)
    k_x, k_dw, k_pw = jax.random.split(key, 3)

    N, C_in, H, W = 2, 4, 16, 16
    C_out, K, PAD = 8, 3, 1

    x = jax.random.normal(k_x, (N, C_in, H, W), dtype=jnp.float32)
    # Deterministic parameter init (nn.Conv2d shapes, bias=False):
    #   conv1.weight:     (C_in, 1, K, K)   groups = C_in
    #   pointwise.weight: (C_out, C_in, 1, 1)
    w_dw = 0.1 * jax.random.normal(k_dw, (C_in, 1, K, K), dtype=jnp.float32)
    w_pw = 0.1 * jax.random.normal(k_pw, (C_out, C_in, 1, 1), dtype=jnp.float32)

    out = separable_conv2d(x, w_dw, w_pw, padding=PAD)
    out = jax.block_until_ready(out)

    ref = _reference_sepconv(x, w_dw, w_pw, padding=PAD)
    assert out.shape == (N, C_out, H, W), out.shape
    assert jnp.allclose(out, ref, atol=1e-5, rtol=1e-5), "mismatch vs reference conv"

    print("KERNEL_OK")
</pallas_src>

<mosaic_0001>
module attributes {stable_mosaic.version = 11 : i64} {
  func.func @_sepconv_kernel(%arg0: i32, %arg1: memref<8x256xf32, #tpu.memory_space<vmem>>, %arg2: memref<9x8x1xf32, #tpu.memory_space<vmem>>, %arg3: memref<4x8x1xf32, #tpu.memory_space<vmem>>, %arg4: memref<2x256xi32, #tpu.memory_space<vmem>>, %arg5: memref<16x256xf32, #tpu.memory_space<vmem>>) attributes {dimension_semantics = [#tpu.dimension_semantics<parallel>], iteration_bounds = array<i64: 1>, scalar_prefetch = 0 : i64, scratch_operands = 0 : i64, tpu.core_type = #tpu.core_type<tc>, window_params = [{transform_indices = @transform_0, window_bounds = array<i64: 8, 256>}, {pipeline_mode = #tpu.pipeline_mode<synchronous>, transform_indices = @transform_1, window_bounds = array<i64: 9, 8, 1>}, {pipeline_mode = #tpu.pipeline_mode<synchronous>, transform_indices = @transform_2, window_bounds = array<i64: 4, 8, 1>}, {pipeline_mode = #tpu.pipeline_mode<synchronous>, transform_indices = @transform_3, window_bounds = array<i64: 2, 256>}, {transform_indices = @transform_4, window_bounds = array<i64: 16, 256>}]} {
    %c0 = arith.constant 0 : index
    %c0_0 = arith.constant 0 : index
    %0 = vector.load %arg1[%c0, %c0_0] : memref<8x256xf32, #tpu.memory_space<vmem>>, vector<8x256xf32>
    %c0_1 = arith.constant 0 : index
    %c0_2 = arith.constant 0 : index
    %1 = vector.load %arg4[%c0_1, %c0_2] : memref<2x256xi32, #tpu.memory_space<vmem>>, vector<2x256xi32>
    %2 = vector.extract_strided_slice %1 {offsets = [0, 0], sizes = [1, 256], strides = [1, 1]} : vector<2x256xi32> to vector<1x256xi32>
    %3 = vector.extract_strided_slice %1 {offsets = [1, 0], sizes = [1, 256], strides = [1, 1]} : vector<2x256xi32> to vector<1x256xi32>
    %cst = arith.constant 0.000000e+00 : f32
    %4 = vector.broadcast %cst : f32 to vector<8x256xf32>
    %c17_i32 = arith.constant 17 : i32
    %5 = tpu.dynamic_rotate %0 by %c17_i32 dim 1 : vector<8x256xf32>, i32 -> vector<8x256xf32>
    %c1_i32 = arith.constant 1 : i32
    %6 = vector.broadcast %c1_i32 : i32 to vector<1x256xi32>
    %7 = arith.cmpi sge, %2, %6 : vector<1x256xi32>
    %c1_i32_3 = arith.constant 1 : i32
    %8 = vector.broadcast %c1_i32_3 : i32 to vector<1x256xi32>
    %9 = arith.cmpi sge, %3, %8 : vector<1x256xi32>
    %10 = arith.andi %7, %9 : vector<1x256xi1>
    %cst_4 = arith.constant 0.000000e+00 : f32
    %11 = vector.shape_cast %10 : vector<1x256xi1> to vector<1x256xi1>
    %12 = vector.broadcast %11 : vector<1x256xi1> to vector<8x256xi1>
    %13 = vector.broadcast %cst_4 : f32 to vector<8x256xf32>
    %14 = arith.select %12, %5, %13 : vector<8x256xi1>, vector<8x256xf32>
    %c0_5 = arith.constant 0 : index
    %c0_6 = arith.constant 0 : index
    %c0_7 = arith.constant 0 : index
    %15 = vector.load %arg2[%c0_5, %c0_6, %c0_7] : memref<9x8x1xf32, #tpu.memory_space<vmem>>, vector<1x8x1xf32>
    %16 = vector.shape_cast %15 : vector<1x8x1xf32> to vector<8x1xf32>
    %17 = vector.broadcast %16 : vector<8x1xf32> to vector<8x256xf32>
    %18 = arith.mulf %14, %17 : vector<8x256xf32>
    %19 = arith.addf %4, %18 : vector<8x256xf32>
    %c16_i32 = arith.constant 16 : i32
    %20 = tpu.dynamic_rotate %0 by %c16_i32 dim 1 : vector<8x256xf32>, i32 -> vector<8x256xf32>
    %c1_i32_8 = arith.constant 1 : i32
    %21 = vector.broadcast %c1_i32_8 : i32 to vector<1x256xi32>
    %22 = arith.cmpi sge, %2, %21 : vector<1x256xi32>
    %cst_9 = arith.constant 0.000000e+00 : f32
    %23 = vector.shape_cast %22 : vector<1x256xi1> to vector<1x256xi1>
    %24 = vector.broadcast %23 : vector<1x256xi1> to vector<8x256xi1>
    %25 = vector.broadcast %cst_9 : f32 to vector<8x256xf32>
    %26 = arith.select %24, %20, %25 : vector<8x256xi1>, vector<8x256xf32>
    %c1 = arith.constant 1 : index
    %c0_10 = arith.constant 0 : index
    %c0_11 = arith.constant 0 : index
    %27 = vector.load %arg2[%c1, %c0_10, %c0_11] : memref<9x8x1xf32, #tpu.memory_space<vmem>>, vector<1x8x1xf32>
    %28 = vector.shape_cast %27 : vector<1x8x1xf32> to vector<8x1xf32>
    %29 = vector.broadcast %28 : vector<8x1xf32> to vector<8x256xf32>
    %30 = arith.mulf %26, %29 : vector<8x256xf32>
    %31 = arith.addf %19, %30 : vector<8x256xf32>
    %c15_i32 = arith.constant 15 : i32
    %32 = tpu.dynamic_rotate %0 by %c15_i32 dim 1 : vector<8x256xf32>, i32 -> vector<8x256xf32>
    %c1_i32_12 = arith.constant 1 : i32
    %33 = vector.broadcast %c1_i32_12 : i32 to vector<1x256xi32>
    %34 = arith.cmpi sge, %2, %33 : vector<1x256xi32>
    %c15_i32_13 = arith.constant 15 : i32
    %35 = vector.broadcast %c15_i32_13 : i32 to vector<1x256xi32>
    %36 = arith.cmpi slt, %3, %35 : vector<1x256xi32>
    %37 = arith.andi %34, %36 : vector<1x256xi1>
    %cst_14 = arith.constant 0.000000e+00 : f32
    %38 = vector.shape_cast %37 : vector<1x256xi1> to vector<1x256xi1>
    %39 = vector.broadcast %38 : vector<1x256xi1> to vector<8x256xi1>
    %40 = vector.broadcast %cst_14 : f32 to vector<8x256xf32>
    %41 = arith.select %39, %32, %40 : vector<8x256xi1>, vector<8x256xf32>
    %c2 = arith.constant 2 : index
    %c0_15 = arith.constant 0 : index
    %c0_16 = arith.constant 0 : index
    %42 = vector.load %arg2[%c2, %c0_15, %c0_16] : memref<9x8x1xf32, #tpu.memory_space<vmem>>, vector<1x8x1xf32>
    %43 = vector.shape_cast %42 : vector<1x8x1xf32> to vector<8x1xf32>
    %44 = vector.broadcast %43 : vector<8x1xf32> to vector<8x256xf32>
    %45 = arith.mulf %41, %44 : vector<8x256xf32>
    %46 = arith.addf %31, %45 : vector<8x256xf32>
    %c1_i32_17 = arith.constant 1 : i32
    %47 = tpu.dynamic_rotate %0 by %c1_i32_17 dim 1 : vector<8x256xf32>, i32 -> vector<8x256xf32>
    %c1_i32_18 = arith.constant 1 : i32
    %48 = vector.broadcast %c1_i32_18 : i32 to vector<1x256xi32>
    %49 = arith.cmpi sge, %3, %48 : vector<1x256xi32>
    %cst_19 = arith.constant 0.000000e+00 : f32
    %50 = vector.shape_cast %49 : vector<1x256xi1> to vector<1x256xi1>
    %51 = vector.broadcast %50 : vector<1x256xi1> to vector<8x256xi1>
    %52 = vector.broadcast %cst_19 : f32 to vector<8x256xf32>
    %53 = arith.select %51, %47, %52 : vector<8x256xi1>, vector<8x256xf32>
    %c3 = arith.constant 3 : index
    %c0_20 = arith.constant 0 : index
    %c0_21 = arith.constant 0 : index
    %54 = vector.load %arg2[%c3, %c0_20, %c0_21] : memref<9x8x1xf32, #tpu.memory_space<vmem>>, vector<1x8x1xf32>
    %55 = vector.shape_cast %54 : vector<1x8x1xf32> to vector<8x1xf32>
    %56 = vector.broadcast %55 : vector<8x1xf32> to vector<8x256xf32>
    %57 = arith.mulf %53, %56 : vector<8x256xf32>
    %58 = arith.addf %46, %57 : vector<8x256xf32>
    %c4 = arith.constant 4 : index
    %c0_22 = arith.constant 0 : index
    %c0_23 = arith.constant 0 : index
    %59 = vector.load %arg2[%c4, %c0_22, %c0_23] : memref<9x8x1xf32, #tpu.memory_space<vmem>>, vector<1x8x1xf32>
    %60 = vector.shape_cast %59 : vector<1x8x1xf32> to vector<8x1xf32>
    %61 = vector.broadcast %60 : vector<8x1xf32> to vector<8x256xf32>
    %62 = arith.mulf %0, %61 : vector<8x256xf32>
    %63 = arith.addf %58, %62 : vector<8x256xf32>
    %c255_i32 = arith.constant 255 : i32
    %64 = tpu.dynamic_rotate %0 by %c255_i32 dim 1 : vector<8x256xf32>, i32 -> vector<8x256xf32>
    %c15_i32_24 = arith.constant 15 : i32
    %65 = vector.broadcast %c15_i32_24 : i32 to vector<1x256xi32>
    %66 = arith.cmpi slt, %3, %65 : vector<1x256xi32>
    %cst_25 = arith.constant 0.000000e+00 : f32
    %67 = vector.shape_cast %66 : vector<1x256xi1> to vector<1x256xi1>
    %68 = vector.broadcast %67 : vector<1x256xi1> to vector<8x256xi1>
    %69 = vector.broadcast %cst_25 : f32 to vector<8x256xf32>
    %70 = arith.select %68, %64, %69 : vector<8x256xi1>, vector<8x256xf32>
    %c5 = arith.constant 5 : index
    %c0_26 = arith.constant 0 : index
    %c0_27 = arith.constant 0 : index
    %71 = vector.load %arg2[%c5, %c0_26, %c0_27] : memref<9x8x1xf32, #tpu.memory_space<vmem>>, vector<1x8x1xf32>
    %72 = vector.shape_cast %71 : vector<1x8x1xf32> to vector<8x1xf32>
    %73 = vector.broadcast %72 : vector<8x1xf32> to vector<8x256xf32>
    %74 = arith.mulf %70, %73 : vector<8x256xf32>
    %75 = arith.addf %63, %74 : vector<8x256xf32>
    %c241_i32 = arith.constant 241 : i32
    %76 = tpu.dynamic_rotate %0 by %c241_i32 dim 1 : vector<8x256xf32>, i32 -> vector<8x256xf32>
    %c15_i32_28 = arith.constant 15 : i32
    %77 = vector.broadcast %c15_i32_28 : i32 to vector<1x256xi32>
    %78 = arith.cmpi slt, %2, %77 : vector<1x256xi32>
    %c1_i32_29 = arith.constant 1 : i32
    %79 = vector.broadcast %c1_i32_29 : i32 to vector<1x256xi32>
    %80 = arith.cmpi sge, %3, %79 : vector<1x256xi32>
    %81 = arith.andi %78, %80 : vector<1x256xi1>
    %cst_30 = arith.constant 0.000000e+00 : f32
    %82 = vector.shape_cast %81 : vector<1x256xi1> to vector<1x256xi1>
    %83 = vector.broadcast %82 : vector<1x256xi1> to vector<8x256xi1>
    %84 = vector.broadcast %cst_30 : f32 to vector<8x256xf32>
    %85 = arith.select %83, %76, %84 : vector<8x256xi1>, vector<8x256xf32>
    %c6 = arith.constant 6 : index
    %c0_31 = arith.constant 0 : index
    %c0_32 = arith.constant 0 : index
    %86 = vector.load %arg2[%c6, %c0_31, %c0_32] : memref<9x8x1xf32, #tpu.memory_space<vmem>>, vector<1x8x1xf32>
    %87 = vector.shape_cast %86 : vector<1x8x1xf32> to vector<8x1xf32>
    %88 = vector.broadcast %87 : vector<8x1xf32> to vector<8x256xf32>
    %89 = arith.mulf %85, %88 : vector<8x256xf32>
    %90 = arith.addf %75, %89 : vector<8x256xf32>
    %c240_i32 = arith.constant 240 : i32
    %91 = tpu.dynamic_rotate %0 by %c240_i32 dim 1 : vector<8x256xf32>, i32 -> vector<8x256xf32>
    %c15_i32_33 = arith.constant 15 : i32
    %92 = vector.broadcast %c15_i32_33 : i32 to vector<1x256xi32>
    %93 = arith.cmpi slt, %2, %92 : vector<1x256xi32>
    %cst_34 = arith.constant 0.000000e+00 : f32
    %94 = vector.shape_cast %93 : vector<1x256xi1> to vector<1x256xi1>
    %95 = vector.broadcast %94 : vector<1x256xi1> to vector<8x256xi1>
    %96 = vector.broadcast %cst_34 : f32 to vector<8x256xf32>
    %97 = arith.select %95, %91, %96 : vector<8x256xi1>, vector<8x256xf32>
    %c7 = arith.constant 7 : index
    %c0_35 = arith.constant 0 : index
    %c0_36 = arith.constant 0 : index
    %98 = vector.load %arg2[%c7, %c0_35, %c0_36] : memref<9x8x1xf32, #tpu.memory_space<vmem>>, vector<1x8x1xf32>
    %99 = vector.shape_cast %98 : vector<1x8x1xf32> to vector<8x1xf32>
    %100 = vector.broadcast %99 : vector<8x1xf32> to vector<8x256xf32>
    %101 = arith.mulf %97, %100 : vector<8x256xf32>
    %102 = arith.addf %90, %101 : vector<8x256xf32>
    %c239_i32 = arith.constant 239 : i32
    %103 = tpu.dynamic_rotate %0 by %c239_i32 dim 1 : vector<8x256xf32>, i32 -> vector<8x256xf32>
    %c15_i32_37 = arith.constant 15 : i32
    %104 = vector.broadcast %c15_i32_37 : i32 to vector<1x256xi32>
    %105 = arith.cmpi slt, %2, %104 : vector<1x256xi32>
    %c15_i32_38 = arith.constant 15 : i32
    %106 = vector.broadcast %c15_i32_38 : i32 to vector<1x256xi32>
    %107 = arith.cmpi slt, %3, %106 : vector<1x256xi32>
    %108 = arith.andi %105, %107 : vector<1x256xi1>
    %cst_39 = arith.constant 0.000000e+00 : f32
    %109 = vector.shape_cast %108 : vector<1x256xi1> to vector<1x256xi1>
    %110 = vector.broadcast %109 : vector<1x256xi1> to vector<8x256xi1>
    %111 = vector.broadcast %cst_39 : f32 to vector<8x256xf32>
    %112 = arith.select %110, %103, %111 : vector<8x256xi1>, vector<8x256xf32>
    %c8 = arith.constant 8 : index
    %c0_40 = arith.constant 0 : index
    %c0_41 = arith.constant 0 : index
    %113 = vector.load %arg2[%c8, %c0_40, %c0_41] : memref<9x8x1xf32, #tpu.memory_space<vmem>>, vector<1x8x1xf32>
    %114 = vector.shape_cast %113 : vector<1x8x1xf32> to vector<8x1xf32>
    %115 = vector.broadcast %114 : vector<8x1xf32> to vector<8x256xf32>
    %116 = arith.mulf %112, %115 : vector<8x256xf32>
    %117 = arith.addf %102, %116 : vector<8x256xf32>
    %c0_42 = arith.constant 0 : index
    %c0_43 = arith.constant 0 : index
    %c0_44 = arith.constant 0 : index
    %118 = vector.load %arg3[%c0_42, %c0_43, %c0_44] : memref<4x8x1xf32, #tpu.memory_space<vmem>>, vector<1x8x1xf32>
    %119 = vector.shape_cast %118 : vector<1x8x1xf32> to vector<8x1xf32>
    %c1_45 = arith.constant 1 : index
    %c0_46 = arith.constant 0 : index
    %c0_47 = arith.constant 0 : index
    %120 = vector.load %arg3[%c1_45, %c0_46, %c0_47] : memref<4x8x1xf32, #tpu.memory_space<vmem>>, vector<1x8x1xf32>
    %121 = vector.shape_cast %120 : vector<1x8x1xf32> to vector<8x1xf32>
    %c2_48 = arith.constant 2 : index
    %c0_49 = arith.constant 0 : index
    %c0_50 = arith.constant 0 : index
    %122 = vector.load %arg3[%c2_48, %c0_49, %c0_50] : memref<4x8x1xf32, #tpu.memory_space<vmem>>, vector<1x8x1xf32>
    %123 = vector.shape_cast %122 : vector<1x8x1xf32> to vector<8x1xf32>
    %c3_51 = arith.constant 3 : index
    %c0_52 = arith.constant 0 : index
    %c0_53 = arith.constant 0 : index
    %124 = vector.load %arg3[%c3_51, %c0_52, %c0_53] : memref<4x8x1xf32, #tpu.memory_space<vmem>>, vector<1x8x1xf32>
    %125 = vector.shape_cast %124 : vector<1x8x1xf32> to vector<8x1xf32>
    %cst_54 = arith.constant 0.000000e+00 : f32
    %126 = vector.broadcast %cst_54 : f32 to vector<8x256xf32>
    %127 = vector.extract_strided_slice %117 {offsets = [0, 0], sizes = [1, 256], strides = [1, 1]} : vector<8x256xf32> to vector<1x256xf32>
    %128 = vector.broadcast %119 : vector<8x1xf32> to vector<8x256xf32>
    %129 = vector.broadcast %127 : vector<1x256xf32> to vector<8x256xf32>
    %130 = arith.mulf %128, %129 : vector<8x256xf32>
    %131 = arith.addf %126, %130 : vector<8x256xf32>
    %132 = vector.extract_strided_slice %117 {offsets = [1, 0], sizes = [1, 256], strides = [1, 1]} : vector<8x256xf32> to vector<1x256xf32>
    %133 = vector.broadcast %121 : vector<8x1xf32> to vector<8x256xf32>
    %134 = vector.broadcast %132 : vector<1x256xf32> to vector<8x256xf32>
    %135 = arith.mulf %133, %134 : vector<8x256xf32>
    %136 = arith.addf %131, %135 : vector<8x256xf32>
    %137 = vector.extract_strided_slice %117 {offsets = [2, 0], sizes = [1, 256], strides = [1, 1]} : vector<8x256xf32> to vector<1x256xf32>
    %138 = vector.broadcast %123 : vector<8x1xf32> to vector<8x256xf32>
    %139 = vector.broadcast %137 : vector<1x256xf32> to vector<8x256xf32>
    %140 = arith.mulf %138, %139 : vector<8x256xf32>
    %141 = arith.addf %136, %140 : vector<8x256xf32>
    %142 = vector.extract_strided_slice %117 {offsets = [3, 0], sizes = [1, 256], strides = [1, 1]} : vector<8x256xf32> to vector<1x256xf32>
    %143 = vector.broadcast %125 : vector<8x1xf32> to vector<8x256xf32>
    %144 = vector.broadcast %142 : vector<1x256xf32> to vector<8x256xf32>
    %145 = arith.mulf %143, %144 : vector<8x256xf32>
    %146 = arith.addf %141, %145 : vector<8x256xf32>
    %c0_55 = arith.constant 0 : index
    %c0_56 = arith.constant 0 : index
    %147 = vector.load %arg5[%c0_55, %c0_56] : memref<16x256xf32, #tpu.memory_space<vmem>>, vector<8x256xf32>
    tpu.vector_store %arg5[%c0_55, %c0_56], %146 {strides = array<i32>} : memref<16x256xf32, #tpu.memory_space<vmem>>, vector<8x256xf32>,
    %cst_57 = arith.constant 0.000000e+00 : f32
    %148 = vector.broadcast %cst_57 : f32 to vector<8x256xf32>
    %149 = vector.extract_strided_slice %117 {offsets = [4, 0], sizes = [1, 256], strides = [1, 1]} : vector<8x256xf32> to vector<1x256xf32>
    %150 = vector.broadcast %119 : vector<8x1xf32> to vector<8x256xf32>
    %151 = vector.broadcast %149 : vector<1x256xf32> to vector<8x256xf32>
    %152 = arith.mulf %150, %151 : vector<8x256xf32>
    %153 = arith.addf %148, %152 : vector<8x256xf32>
    %154 = vector.extract_strided_slice %117 {offsets = [5, 0], sizes = [1, 256], strides = [1, 1]} : vector<8x256xf32> to vector<1x256xf32>
    %155 = vector.broadcast %121 : vector<8x1xf32> to vector<8x256xf32>
    %156 = vector.broadcast %154 : vector<1x256xf32> to vector<8x256xf32>
    %157 = arith.mulf %155, %156 : vector<8x256xf32>
    %158 = arith.addf %153, %157 : vector<8x256xf32>
    %159 = vector.extract_strided_slice %117 {offsets = [6, 0], sizes = [1, 256], strides = [1, 1]} : vector<8x256xf32> to vector<1x256xf32>
    %160 = vector.broadcast %123 : vector<8x1xf32> to vector<8x256xf32>
    %161 = vector.broadcast %159 : vector<1x256xf32> to vector<8x256xf32>
    %162 = arith.mulf %160, %161 : vector<8x256xf32>
    %163 = arith.addf %158, %162 : vector<8x256xf32>
    %164 = vector.extract_strided_slice %117 {offsets = [7, 0], sizes = [1, 256], strides = [1, 1]} : vector<8x256xf32> to vector<1x256xf32>
    %165 = vector.broadcast %125 : vector<8x1xf32> to vector<8x256xf32>
    %166 = vector.broadcast %164 : vector<1x256xf32> to vector<8x256xf32>
    %167 = arith.mulf %165, %166 : vector<8x256xf32>
    %168 = arith.addf %163, %167 : vector<8x256xf32>
    %c8_58 = arith.constant 8 : index
    %c0_59 = arith.constant 0 : index
    %169 = vector.load %arg5[%c8_58, %c0_59] : memref<16x256xf32, #tpu.memory_space<vmem>>, vector<8x256xf32>
    tpu.vector_store %arg5[%c8_58, %c0_59], %168 {strides = array<i32>} : memref<16x256xf32, #tpu.memory_space<vmem>>, vector<8x256xf32>,
    return
  }
  func.func @transform_0(%arg0: i32) -> (i32, i32) {
    %c0_i32 = arith.constant 0 : i32
    %c0_i32_0 = arith.constant 0 : i32
    return %arg0, %c0_i32 : i32, i32
  }
  func.func @transform_1(%arg0: i32) -> (i32, i32, i32) {
    %c0_i32 = arith.constant 0 : i32
    %c0_i32_0 = arith.constant 0 : i32
    %c0_i32_1 = arith.constant 0 : i32
    %c0_i32_2 = arith.constant 0 : i32
    return %c0_i32, %c0_i32_0, %c0_i32_1 : i32, i32, i32
  }
  func.func @transform_2(%arg0: i32) -> (i32, i32, i32) {
    %c0_i32 = arith.constant 0 : i32
    %c0_i32_0 = arith.constant 0 : i32
    %c0_i32_1 = arith.constant 0 : i32
    %c0_i32_2 = arith.constant 0 : i32
    return %c0_i32, %c0_i32_0, %c0_i32_1 : i32, i32, i32
  }
  func.func @transform_3(%arg0: i32) -> (i32, i32) {
    %c0_i32 = arith.constant 0 : i32
    %c0_i32_0 = arith.constant 0 : i32
    %c0_i32_1 = arith.constant 0 : i32
    return %c0_i32, %c0_i32_0 : i32, i32
  }
  func.func @transform_4(%arg0: i32) -> (i32, i32) {
    %c0_i32 = arith.constant 0 : i32
    %c0_i32_0 = arith.constant 0 : i32
    return %arg0, %c0_i32 : i32, i32
  }
}

</mosaic_0001>

<llo_original>
// kernel: tpu_custom_call.1
$region0: #{tpu_custom_call.1}
  #allocation0 [shape = 'u32[]', space=smem, size = 0x4, offset = 0x4, fixed_abs, tag = 'smem constant byte address 0x4 - core index']
  #allocation1 [shape = 'u32[144,128]{1,0:T(1,128)}', space=vmem, size = 0x12000, scoped, tag = 'internal scratch']
  %s0 = inlined_call_operand.vmem [shape: f32[8,256], index: 0, kind: input, shape index: {}]
  %s1 = inlined_call_operand.vmem [shape: f32[9,8,1], index: 1, kind: input, shape index: {}]
  %s2 = inlined_call_operand.vmem [shape: f32[4,8,1], index: 2, kind: input, shape index: {}]
  %s3 = inlined_call_operand.vmem [shape: s32[2,256], index: 3, kind: input, shape index: {}]
  %s4 = inlined_call_operand.hbm [shape: f32[16,256], index: 4, kind: output, shape index: {}]
  %s5 = sld [smem:[#allocation0]]
  $region26: #{tpu_custom_call.1} parent=0
    _
  %s7 = ssub.s32 1, %s5
  %s8 = scalar_select 0, %s7, %s5
  $region1: #{tpu_custom_call.1} parent=0
    #allocation2 [shape = 'u8[16384]{0}', space=vmem, size = 0x4000, scoped, tag = 'output window, operand 0, single buffered']
    #allocation3 [shape = 's32[1]{0}', space=sflag, size = 0x4, scoped, tag = 'scoped memory for tpu_custom_call.1']
    %9 = vsyncpa [#allocation3], 0
    // Predicated region
    $region2: #{tpu_custom_call.1} parent=1 // pred_check
      _
    $region3: #{tpu_custom_call.1} parent=1 // pred_check_branch
      %11 = sbr.rel (0) target = $region5
    $region4: #{tpu_custom_call.1} parent=1 // pred_region
      _
    $region5: #{tpu_custom_call.1} parent=1 // pred_fallthru
      _
    // Predicated region
    $region6: #{tpu_custom_call.1} parent=1 // pred_check
      _
    $region7: #{tpu_custom_call.1} parent=1 // pred_check_branch
      %13 = sbr.rel (0) target = $region9
    $region8: #{tpu_custom_call.1} parent=1 // pred_region
      _
    $region9: #{tpu_custom_call.1} parent=1 // pred_fallthru
      _
    // Predicated region
    $region10: #{tpu_custom_call.1} parent=1 // pred_check
      _
    $region11: #{tpu_custom_call.1} parent=1 // pred_check_branch
      %15 = sbr.rel (0) target = $region13
    $region12: #{tpu_custom_call.1} parent=1 // pred_region
      _
    $region13: #{tpu_custom_call.1} parent=1 // pred_fallthru
      _
    // Predicated region
    $region14: #{tpu_custom_call.1} parent=1 // pred_check
      _
    $region15: #{tpu_custom_call.1} parent=1 // pred_check_branch
      %17 = sbr.rel (0) target = $region17
    $region16: #{tpu_custom_call.1} parent=1 // pred_region
      _
    $region17: #{tpu_custom_call.1} parent=1 // pred_fallthru
      _
    %v18 = vld [vmem:[%s0] sm:$0xff]
    %v19 = vld [vmem:[%s0 + $0x8] sm:$0xff]
    %v20 = vld [vmem:[%s3] sm:$0xf]
    %21 = vrot.lane.b32.xlu0 %v18, 17
    %v22 = vpop.permute.xlu0 %21
    %23 = vrot.lane.b32.xlu0 %v19, 17
    %v24 = vpop.permute.xlu0 %23
    %v25 = vlaneseq
    %v26 = vand.u32 %v25, 127
    %vm27 = vcmp.lt.s32.totalorder %v26, 17
    %v28 = vsel %vm27, %v22, %v24
    %v29 = vsel %vm27, %v24, %v22
    %vm30 = vcmp.ge.s32.totalorder %v20, 1
    %v31 = vsel %vm30, 1, 0
    %v32 = vrot.slane %v31, 7
    %v33 = vrot.slane %v32, 2
    %vm34 = vcmp.ne.s32.totalorder %v33, 0
    %vm35 = vmand %vm30, %vm34
    %v36 = vsel %vm35, 1, 0
    %v37 = vlaneseq
    %v38 = vshrl.u32 %v37, 7
    %v39 = vsub.s32 0, %v38
    %v40 = vrot.slane %v36, %v39
    %v41 = vlaneseq
    %v42 = vshrl.u32 %v41, 7
    %v43 = vsub.s32 2, %v42
    %v44 = vrot.slane %v36, %v43
    %v45 = vlaneseq
    %v46 = vshrl.u32 %v45, 7
    %v47 = vsub.s32 0, %v46
    %v48 = vrot.slane %v40, %v47
    %v49 = vlaneseq
    %v50 = vshrl.u32 %v49, 7
    %v51 = vsub.s32 0, %v50
    %v52 = vrot.slane %v44, %v51
    %vm53 = vcmp.eq.s32.totalorder %v48, 1
    %vm54 = vcmp.eq.s32.totalorder %v52, 1
    %v55 = vsel %vm53, %v29, 0.0
    %v56 = vsel %vm54, %v28, 0.0
    %v57 = vld [vmem:[%s1] sm:$0xff]
    %59 = vset.pattern.permute.xlu0 0
    %60 = vperm.xlu0 %59, %v57
    %v61 = vpop.permute.xlu0 %60
    %v63 = vmul.f32 %v55, %v61
    %v64 = vmul.f32 %v56, %v61
    %v65 = vadd.f32 %v63, 0.0
    %v66 = vadd.f32 %v64, 0.0
    %67 = vrot.lane.b32.xlu0 %v18, 16
    %v68 = vpop.permute.xlu0 %67
    %69 = vrot.lane.b32.xlu0 %v19, 16
    %v70 = vpop.permute.xlu0 %69
    %vm71 = vcmp.lt.s32.totalorder %v26, 16
    %v72 = vsel %vm71, %v68, %v70
    %v73 = vsel %vm71, %v70, %v68
    %v74 = vlaneseq
    %v75 = vshrl.u32 %v74, 7
    %v76 = vsub.s32 0, %v75
    %v77 = vrot.slane %v31, %v76
    %v78 = vlaneseq
    %v79 = vshrl.u32 %v78, 7
    %v80 = vsub.s32 2, %v79
    %v81 = vrot.slane %v31, %v80
    %v82 = vlaneseq
    %v83 = vshrl.u32 %v82, 7
    %v84 = vsub.s32 0, %v83
    %v85 = vrot.slane %v77, %v84
    %v86 = vlaneseq
    %v87 = vshrl.u32 %v86, 7
    %v88 = vsub.s32 0, %v87
    %v89 = vrot.slane %v81, %v88
    %vm90 = vcmp.eq.s32.totalorder %v85, 1
    %vm91 = vcmp.eq.s32.totalorder %v89, 1
    %v92 = vsel %vm90, %v73, 0.0
    %v93 = vsel %vm91, %v72, 0.0
    %s94 = scalar_lea.vmem %s1, 8
    %v95 = vld [vmem:[%s94] sm:$0xff]
    %97 = vset.pattern.permute.xlu0 0
    %98 = vperm.xlu0 %97, %v95
    %v99 = vpop.permute.xlu0 %98
    %v101 = vmul.f32 %v92, %v99
    %v102 = vmul.f32 %v93, %v99
    %v103 = vadd.f32 %v65, %v101
    %v104 = vadd.f32 %v66, %v102
    %105 = vrot.lane.b32.xlu0 %v18, 15
    %v106 = vpop.permute.xlu0 %105
    %107 = vrot.lane.b32.xlu0 %v19, 15
    %v108 = vpop.permute.xlu0 %107
    %vm109 = vcmp.lt.s32.totalorder %v26, 15
    %v110 = vsel %vm109, %v106, %v108
    %v111 = vsel %vm109, %v108, %v106
    %vm112 = vcmp.lt.s32.totalorder %v20, 15
    %v113 = vsel %vm112, 1, 0
    %v114 = vrot.slane %v113, 7
    %v115 = vrot.slane %v114, 2
    %vm116 = vcmp.ne.s32.totalorder %v115, 0
    %vm117 = vmand %vm30, %vm116
    %v118 = vsel %vm117, 1, 0
    %v119 = vlaneseq
    %v120 = vshrl.u32 %v119, 7
    %v121 = vsub.s32 0, %v120
    %v122 = vrot.slane %v118, %v121
    %v123 = vlaneseq
    %v124 = vshrl.u32 %v123, 7
    %v125 = vsub.s32 2, %v124
    %v126 = vrot.slane %v118, %v125
    %v127 = vlaneseq
    %v128 = vshrl.u32 %v127, 7
    %v129 = vsub.s32 0, %v128
    %v130 = vrot.slane %v122, %v129
    %v131 = vlaneseq
    %v132 = vshrl.u32 %v131, 7
    %v133 = vsub.s32 0, %v132
    %v134 = vrot.slane %v126, %v133
    %vm135 = vcmp.eq.s32.totalorder %v130, 1
    %vm136 = vcmp.eq.s32.totalorder %v134, 1
    %v137 = vsel %vm135, %v111, 0.0
    %v138 = vsel %vm136, %v110, 0.0
    %s139 = scalar_lea.vmem %s1, 16
    %v140 = vld [vmem:[%s139] sm:$0xff]
    %142 = vset.pattern.permute.xlu0 0
    %143 = vperm.xlu0 %142, %v140
    %v144 = vpop.permute.xlu0 %143
    %v146 = vmul.f32 %v137, %v144
    %v147 = vmul.f32 %v138, %v144
    %v148 = vadd.f32 %v103, %v146
    %v149 = vadd.f32 %v104, %v147
    %150 = vrot.lane.b32.xlu0 %v18, 1
    %v151 = vpop.permute.xlu0 %150
    %152 = vrot.lane.b32.xlu0 %v19, 1
    %v153 = vpop.permute.xlu0 %152
    %vm154 = vcmp.lt.s32.totalorder %v26, 1
    %v155 = vsel %vm154, %v151, %v153
    %v156 = vsel %vm154, %v153, %v151
    %v157 = vlaneseq
    %v158 = vshrl.u32 %v157, 7
    %v159 = vsub.s32 1, %v158
    %v160 = vrot.slane %v31, %v159
    %v161 = vlaneseq
    %v162 = vshrl.u32 %v161, 7
    %v163 = vsub.s32 3, %v162
    %v164 = vrot.slane %v31, %v163
    %v165 = vlaneseq
    %v166 = vshrl.u32 %v165, 7
    %v167 = vsub.s32 1, %v166
    %v168 = vrot.slane %v160, %v167
    %v169 = vlaneseq
    %v170 = vshrl.u32 %v169, 7
    %v171 = vsub.s32 1, %v170
    %v172 = vrot.slane %v164, %v171
    %vm173 = vcmp.eq.s32.totalorder %v168, 1
    %vm174 = vcmp.eq.s32.totalorder %v172, 1
    %v175 = vsel %vm173, %v156, 0.0
    %v176 = vsel %vm174, %v155, 0.0
    %s177 = scalar_lea.vmem %s1, 24
    %v178 = vld [vmem:[%s177] sm:$0xff]
    %180 = vset.pattern.permute.xlu0 0
    %181 = vperm.xlu0 %180, %v178
    %v182 = vpop.permute.xlu0 %181
    %v184 = vmul.f32 %v175, %v182
    %v185 = vmul.f32 %v176, %v182
    %v186 = vadd.f32 %v148, %v184
    %v187 = vadd.f32 %v149, %v185
    %s188 = scalar_lea.vmem %s1, 32
    %v189 = vld [vmem:[%s188] sm:$0xff]
    %191 = vset.pattern.permute.xlu0 0
    %192 = vperm.xlu0 %191, %v189
    %v193 = vpop.permute.xlu0 %192
    %v195 = vmul.f32 %v18, %v193
    %v196 = vmul.f32 %v19, %v193
    %v197 = vadd.f32 %v186, %v195
    %v198 = vadd.f32 %v187, %v196
    %199 = vrot.lane.b32.xlu0 %v18, 127
    %v200 = vpop.permute.xlu0 %199
    %201 = vrot.lane.b32.xlu0 %v19, 127
    %v202 = vpop.permute.xlu0 %201
    %vm203 = vcmp.lt.s32.totalorder %v26, 127
    %v204 = vsel %vm203, %v200, %v202
    %v205 = vsel %vm203, %v202, %v200
    %v206 = vlaneseq
    %v207 = vshrl.u32 %v206, 7
    %v208 = vsub.s32 1, %v207
    %v209 = vrot.slane %v113, %v208
    %v210 = vlaneseq
    %v211 = vshrl.u32 %v210, 7
    %v212 = vsub.s32 3, %v211
    %v213 = vrot.slane %v113, %v212
    %v214 = vlaneseq
    %v215 = vshrl.u32 %v214, 7
    %v216 = vsub.s32 1, %v215
    %v217 = vrot.slane %v209, %v216
    %v218 = vlaneseq
    %v219 = vshrl.u32 %v218, 7
    %v220 = vsub.s32 1, %v219
    %v221 = vrot.slane %v213, %v220
    %vm222 = vcmp.eq.s32.totalorder %v217, 1
    %vm223 = vcmp.eq.s32.totalorder %v221, 1
    %v224 = vsel %vm222, %v204, 0.0
    %v225 = vsel %vm223, %v205, 0.0
    %s226 = scalar_lea.vmem %s1, 40
    %v227 = vld [vmem:[%s226] sm:$0xff]
    %229 = vset.pattern.permute.xlu0 0
    %230 = vperm.xlu0 %229, %v227
    %v231 = vpop.permute.xlu0 %230
    %v233 = vmul.f32 %v224, %v231
    %v234 = vmul.f32 %v225, %v231
    %v235 = vadd.f32 %v197, %v233
    %v236 = vadd.f32 %v198, %v234
    %237 = vrot.lane.b32.xlu0 %v18, 113
    %v238 = vpop.permute.xlu0 %237
    %239 = vrot.lane.b32.xlu0 %v19, 113
    %v240 = vpop.permute.xlu0 %239
    %vm241 = vcmp.lt.s32.totalorder %v26, 113
    %v242 = vsel %vm241, %v238, %v240
    %v243 = vsel %vm241, %v240, %v238
    %vm244 = vmand %vm112, %vm34
    %v245 = vsel %vm244, 1, 0
    %v246 = vlaneseq
    %v247 = vshrl.u32 %v246, 7
    %v248 = vsub.s32 0, %v247
    %v249 = vrot.slane %v245, %v248
    %v250 = vlaneseq
    %v251 = vshrl.u32 %v250, 7
    %v252 = vsub.s32 2, %v251
    %v253 = vrot.slane %v245, %v252
    %v254 = vlaneseq
    %v255 = vshrl.u32 %v254, 7
    %v256 = vsub.s32 0, %v255
    %v257 = vrot.slane %v249, %v256
    %v258 = vlaneseq
    %v259 = vshrl.u32 %v258, 7
    %v260 = vsub.s32 0, %v259
    %v261 = vrot.slane %v253, %v260
    %vm262 = vcmp.eq.s32.totalorder %v257, 1
    %vm263 = vcmp.eq.s32.totalorder %v261, 1
    %v264 = vsel %vm262, %v242, 0.0
    %v265 = vsel %vm263, %v243, 0.0
    %s266 = scalar_lea.vmem %s1, 48
    %v267 = vld [vmem:[%s266] sm:$0xff]
    %269 = vset.pattern.permute.xlu0 0
    %270 = vperm.xlu0 %269, %v267
    %v271 = vpop.permute.xlu0 %270
    %v273 = vmul.f32 %v264, %v271
    %v274 = vmul.f32 %v265, %v271
    %v275 = vadd.f32 %v235, %v273
    %v276 = vadd.f32 %v236, %v274
    %277 = vrot.lane.b32.xlu0 %v18, 112
    %v278 = vpop.permute.xlu0 %277
    %279 = vrot.lane.b32.xlu0 %v19, 112
    %v280 = vpop.permute.xlu0 %279
    %vm281 = vcmp.lt.s32.totalorder %v26, 112
    %v282 = vsel %vm281, %v278, %v280
    %v283 = vsel %vm281, %v280, %v278
    %v284 = vlaneseq
    %v285 = vshrl.u32 %v284, 7
    %v286 = vsub.s32 0, %v285
    %v287 = vrot.slane %v113, %v286
    %v288 = vlaneseq
    %v289 = vshrl.u32 %v288, 7
    %v290 = vsub.s32 2, %v289
    %v291 = vrot.slane %v113, %v290
    %v292 = vlaneseq
    %v293 = vshrl.u32 %v292, 7
    %v294 = vsub.s32 0, %v293
    %v295 = vrot.slane %v287, %v294
    %v296 = vlaneseq
    %v297 = vshrl.u32 %v296, 7
    %v298 = vsub.s32 0, %v297
    %v299 = vrot.slane %v291, %v298
    %vm300 = vcmp.eq.s32.totalorder %v295, 1
    %vm301 = vcmp.eq.s32.totalorder %v299, 1
    %v302 = vsel %vm300, %v282, 0.0
    %v303 = vsel %vm301, %v283, 0.0
    %s304 = scalar_lea.vmem %s1, 56
    %v305 = vld [vmem:[%s304] sm:$0xff]
    %307 = vset.pattern.permute.xlu0 0
    %308 = vperm.xlu0 %307, %v305
    %v309 = vpop.permute.xlu0 %308
    %v311 = vmul.f32 %v302, %v309
    %v312 = vmul.f32 %v303, %v309
    %v313 = vadd.f32 %v275, %v311
    %v314 = vadd.f32 %v276, %v312
    %315 = vrot.lane.b32.xlu0 %v18, 111
    %v316 = vpop.permute.xlu0 %315
    %317 = vrot.lane.b32.xlu0 %v19, 111
    %v318 = vpop.permute.xlu0 %317
    %vm319 = vcmp.lt.s32.totalorder %v26, 111
    %v320 = vsel %vm319, %v316, %v318
    %v321 = vsel %vm319, %v318, %v316
    %vm322 = vmand %vm112, %vm116
    %v323 = vsel %vm322, 1, 0
    %v324 = vlaneseq
    %v325 = vshrl.u32 %v324, 7
    %v326 = vsub.s32 0, %v325
    %v327 = vrot.slane %v323, %v326
    %v328 = vlaneseq
    %v329 = vshrl.u32 %v328, 7
    %v330 = vsub.s32 2, %v329
    %v331 = vrot.slane %v323, %v330
    %v332 = vlaneseq
    %v333 = vshrl.u32 %v332, 7
    %v334 = vsub.s32 0, %v333
    %v335 = vrot.slane %v327, %v334
    %v336 = vlaneseq
    %v337 = vshrl.u32 %v336, 7
    %v338 = vsub.s32 0, %v337
    %v339 = vrot.slane %v331, %v338
    %vm340 = vcmp.eq.s32.totalorder %v335, 1
    %vm341 = vcmp.eq.s32.totalorder %v339, 1
    %v342 = vsel %vm340, %v320, 0.0
    %v343 = vsel %vm341, %v321, 0.0
    %s344 = scalar_lea.vmem %s1, 64
    %v345 = vld [vmem:[%s344] sm:$0xff]
    %347 = vset.pattern.permute.xlu0 0
    %348 = vperm.xlu0 %347, %v345
    %v349 = vpop.permute.xlu0 %348
    %v351 = vmul.f32 %v342, %v349
    %v352 = vmul.f32 %v343, %v349
    %v353 = vadd.f32 %v313, %v351
    %v354 = vadd.f32 %v314, %v352
    %v355 = vld [vmem:[%s2] sm:$0xff]
    %s356 = scalar_lea.vmem %s2, 8
    %v357 = vld [vmem:[%s356] sm:$0xff]
    %s358 = scalar_lea.vmem %s2, 16
    %v359 = vld [vmem:[%s358] sm:$0xff]
    %s360 = scalar_lea.vmem %s2, 24
    %v361 = vld [vmem:[%s360] sm:$0xff]
    %363 = vset.pattern.permute.xlu0 0
    %364 = vperm.xlu0 %363, %v355
    %v365 = vpop.permute.xlu0 %364
    %v367 = vlaneseq
    %v368 = vshrl.u32 %v367, 7
    %v369 = vsub.s32 0, %v368
    %v370 = vrot.slane %v353, %v369
    %v371 = vlaneseq
    %v372 = vshrl.u32 %v371, 7
    %v373 = vsub.s32 0, %v372
    %v374 = vrot.slane %v354, %v373
    %v375 = vmul.f32 %v365, %v370
    %v376 = vmul.f32 %v365, %v374
    %v377 = vadd.f32 %v375, 0.0
    %v378 = vadd.f32 %v376, 0.0
    %380 = vset.pattern.permute.xlu0 0
    %381 = vperm.xlu0 %380, %v357
    %v382 = vpop.permute.xlu0 %381
    %v384 = vlaneseq
    %v385 = vshrl.u32 %v384, 7
    %v386 = vsub.s32 1, %v385
    %v387 = vrot.slane %v353, %v386
    %v388 = vlaneseq
    %v389 = vshrl.u32 %v388, 7
    %v390 = vsub.s32 1, %v389
    %v391 = vrot.slane %v354, %v390
    %v392 = vmul.f32 %v382, %v387
    %v393 = vmul.f32 %v382, %v391
    %v394 = vadd.f32 %v377, %v392
    %v395 = vadd.f32 %v378, %v393
    %397 = vset.pattern.permute.xlu0 0
    %398 = vperm.xlu0 %397, %v359
    %v399 = vpop.permute.xlu0 %398
    %v401 = vlaneseq
    %v402 = vshrl.u32 %v401, 7
    %v403 = vsub.s32 2, %v402
    %v404 = vrot.slane %v353, %v403
    %v405 = vlaneseq
    %v406 = vshrl.u32 %v405, 7
    %v407 = vsub.s32 2, %v406
    %v408 = vrot.slane %v354, %v407
    %v409 = vmul.f32 %v399, %v404
    %v410 = vmul.f32 %v399, %v408
    %v411 = vadd.f32 %v394, %v409
    %v412 = vadd.f32 %v395, %v410
    %414 = vset.pattern.permute.xlu0 0
    %415 = vperm.xlu0 %414, %v361
    %v416 = vpop.permute.xlu0 %415
    %v418 = vlaneseq
    %v419 = vshrl.u32 %v418, 7
    %v420 = vsub.s32 3, %v419
    %v421 = vrot.slane %v353, %v420
    %v422 = vlaneseq
    %v423 = vshrl.u32 %v422, 7
    %v424 = vsub.s32 3, %v423
    %v425 = vrot.slane %v354, %v424
    %v426 = vmul.f32 %v416, %v421
    %v427 = vmul.f32 %v416, %v425
    %v428 = vadd.f32 %v411, %v426
    %v429 = vadd.f32 %v412, %v427
    %430 = vst [vmem:[#allocation2] sm:$0xff] %v428
    %431 = vst [vmem:[#allocation2 + $0x8] sm:$0xff] %v429
    %v432 = vlaneseq
    %v433 = vshrl.u32 %v432, 7
    %v434 = vsub.s32 4, %v433
    %v435 = vrot.slane %v353, %v434
    %v436 = vlaneseq
    %v437 = vshrl.u32 %v436, 7
    %v438 = vsub.s32 4, %v437
    %v439 = vrot.slane %v354, %v438
    %v440 = vmul.f32 %v365, %v435
    %v441 = vmul.f32 %v365, %v439
    %v442 = vadd.f32 %v440, 0.0
    %v443 = vadd.f32 %v441, 0.0
    %v444 = vlaneseq
    %v445 = vshrl.u32 %v444, 7
    %v446 = vsub.s32 5, %v445
    %v447 = vrot.slane %v353, %v446
    %v448 = vlaneseq
    %v449 = vshrl.u32 %v448, 7
    %v450 = vsub.s32 5, %v449
    %v451 = vrot.slane %v354, %v450
    %v452 = vmul.f32 %v382, %v447
    %v453 = vmul.f32 %v382, %v451
    %v454 = vadd.f32 %v442, %v452
    %v455 = vadd.f32 %v443, %v453
    %v456 = vlaneseq
    %v457 = vshrl.u32 %v456, 7
    %v458 = vsub.s32 6, %v457
    %v459 = vrot.slane %v353, %v458
    %v460 = vlaneseq
    %v461 = vshrl.u32 %v460, 7
    %v462 = vsub.s32 6, %v461
    %v463 = vrot.slane %v354, %v462
    %v464 = vmul.f32 %v399, %v459
    %v465 = vmul.f32 %v399, %v463
    %v466 = vadd.f32 %v454, %v464
    %v467 = vadd.f32 %v455, %v465
    %v468 = vlaneseq
    %v469 = vshrl.u32 %v468, 7
    %v470 = vsub.s32 7, %v469
    %v471 = vrot.slane %v353, %v470
    %v472 = vlaneseq
    %v473 = vshrl.u32 %v472, 7
    %v474 = vsub.s32 7, %v473
    %v475 = vrot.slane %v354, %v474
    %v476 = vmul.f32 %v416, %v471
    %v477 = vmul.f32 %v416, %v475
    %v478 = vadd.f32 %v466, %v476
    %v479 = vadd.f32 %v467, %v477
    %480 = vst [vmem:[#allocation2 + $0x10] sm:$0xff] %v478
    %481 = vst [vmem:[#allocation2 + $0x18] sm:$0xff] %v479
    // Predicated region
    $region18: #{tpu_custom_call.1} parent=1 // pred_check
      _
    $region19: #{tpu_custom_call.1} parent=1 // pred_check_branch
      %483 = sbr.rel (0) target = $region21
    $region20: #{tpu_custom_call.1} parent=1 // pred_region
      %s485 = ssub.s32 512, 512
      %486 = vsyncadd [#allocation3], %s485
      %s487 = sshll.u32 [#allocation2], 4
      %s488 = int_to_ptr.vmem [resolvable:$true] %s487
      %493 = dma.vmem_to_hbm [thread:$0]  %s488, 512, %s4, [#allocation3], 256, 256, 16
    $region21: #{tpu_custom_call.1} parent=1 // pred_fallthru
      _
    // Predicated region
    $region22: #{tpu_custom_call.1} parent=1 // pred_check
      _
    $region23: #{tpu_custom_call.1} parent=1 // pred_check_branch
      %495 = sbr.rel (0) target = $region25
    $region24: #{tpu_custom_call.1} parent=1 // pred_region
      %496 = dma.done [#allocation3], 512
    $region25: #{tpu_custom_call.1} parent=1 // pred_fallthru
      _
    %497 = vsyncpa [#allocation3], 1

</llo_original>
